<compile_context>
chip_gen: v5e
topology: v5e:2x2
jax: 0.10.0
libtpu: 0.0.40
codegen_flags: <defaults>
</compile_context>

<pallas_src>
import math
import functools

import jax
import jax.numpy as jnp
from jax import lax
from jax.experimental import pallas as pl
from jax.experimental.pallas import tpu as pltpu


def _attention_kernel(q_ref, wq_ref, k_ref, v_ref, wout_ref, *rest,
                      norm_factor, n_heads, key_dim, val_dim):
    """One batch-block of multi-head attention.

    q_ref    : (tb*nq, input_dim)        compute dtype (flattened batch*query)
    wq_ref   : (input_dim, H*key_dim)    compute dtype (head-major columns)
    k_ref    : (tb, graph, H*key_dim)    compute dtype (lane-dense heads)
    v_ref    : (tb, graph, H*val_dim)    compute dtype
    wout_ref : (H*val_dim, embed_dim)    compute dtype
    mask_ref : (tb, nq, graph) int32, optional (nonzero == masked out)
    out_ref  : (tb*nq, embed_dim)        float32
    """
    if len(rest) == 2:
        mask_ref, out_ref = rest
    else:
        (out_ref,) = rest
        mask_ref = None

    rows = q_ref.shape[0]
    tb, graph, _ = k_ref.shape
    nq = rows // tb
    neg_big = jnp.float32(-1e30)

    # Fused query projection for all heads in one MXU pass:
    #   (tb*nq, input_dim) @ (input_dim, H*key_dim)  -> f32 accumulate.
    qf = lax.dot_general(q_ref[...], wq_ref[...], (((1,), (0,)), ((), ())),
                         preferred_element_type=jnp.float32)
    qf = qf.reshape(tb, nq, n_heads * key_dim).astype(k_ref.dtype)

    k_all = k_ref[...]
    v_all = v_ref[...]
    masked = (mask_ref[...] != 0) if mask_ref is not None else None

    # Per-head scores / softmax / PV.  Heads are a short static unroll over
    # cheap static lane slices; the per-head output projections are fused into
    # a single MXU contraction below.
    pv_heads = []
    for h in range(n_heads):
        q_h = qf[:, :, h * key_dim:(h + 1) * key_dim]       # (tb, nq, kd)
        k_h = k_all[:, :, h * key_dim:(h + 1) * key_dim]    # (tb, graph, kd)
        v_h = v_all[:, :, h * val_dim:(h + 1) * val_dim]    # (tb, graph, vd)

        # Contract key_dim, batch over the batch block (no materialized K^T).
        s = norm_factor * lax.dot_general(
            q_h, k_h, (((2,), (2,)), ((0,), (0,))),
            preferred_element_type=jnp.float32)              # (tb, nq, graph)
        if masked is not None:
            s = jnp.where(masked, neg_big, s)                # f32 mask bias

        smax = jnp.max(s, axis=-1, keepdims=True)
        e = jnp.exp(s - smax)                                # masked -> 0
        attn = e * pl.reciprocal(jnp.sum(e, axis=-1, keepdims=True),
                                 approx=True)

        pv_heads.append(lax.dot_general(
            attn.astype(v_all.dtype), v_h, (((2,), (1,)), ((0,), (0,))),
            preferred_element_type=jnp.float32))             # (tb, nq, vd) f32

    # Fused output projection: lane-concat heads (head-major, matching
    # W_out.view(H*val_dim, embed)) and do ONE contraction of depth H*val_dim
    # instead of H accumulated depth-val_dim matmuls.
    pv_all = pv_heads[0] if n_heads == 1 else jnp.concatenate(pv_heads, axis=-1)
    pv_all = pv_all.reshape(rows, n_heads * val_dim).astype(wout_ref.dtype)
    out = lax.dot_general(pv_all, wout_ref[...], (((1,), (0,)), ((), ())),
                          preferred_element_type=jnp.float32)
    out_ref[...] = out.astype(out_ref.dtype)


def _vmem_capacity_bytes():
    """Per-core VMEM capacity; conservative fallback if the query fails."""
    try:
        info = pltpu.get_tpu_info()
        cap = getattr(info, "vmem_capacity_bytes", None)
        if cap:
            return int(cap)
    except Exception:
        pass
    return 64 * 1024 * 1024  # v7x per-TensorCore (smallest of the targets)


def _padded_bytes(shape, dtype):
    """VMEM bytes of one block after (sublane, lane) tile padding."""
    itemsize = jnp.dtype(dtype).itemsize
    sub = {4: 8, 2: 16, 1: 32}.get(itemsize, 8)
    dims = list(shape)
    if len(dims) >= 1:
        dims[-1] = -(-dims[-1] // 128) * 128
    if len(dims) >= 2:
        dims[-2] = -(-dims[-2] // sub) * sub
    n = 1
    for d in dims:
        n *= d
    return n * itemsize


def _step_vmem_bytes(tb, n_query, input_dim, graph, n_heads, key_dim, val_dim,
                     embed_dim, compute_dtype, has_mask):
    """Double-buffered VMEM footprint of one grid step."""
    b = 0
    b += 2 * _padded_bytes((tb * n_query, input_dim), compute_dtype)       # q
    b += 2 * _padded_bytes((input_dim, n_heads * key_dim), compute_dtype)  # W_q
    b += 2 * _padded_bytes((tb, graph, n_heads * key_dim), compute_dtype)  # K
    b += 2 * _padded_bytes((tb, graph, n_heads * val_dim), compute_dtype)  # V
    b += 2 * _padded_bytes((n_heads * val_dim, embed_dim), compute_dtype)  # W_o
    b += 2 * _padded_bytes((tb * n_query, embed_dim), jnp.float32)         # out
    if has_mask:
        b += 2 * _padded_bytes((tb, n_query, graph), jnp.int32)            # mask
    return b


def _choose_batch_block(batch, n_query, row_align, step_bytes_fn, budget):
    """Largest batch block whose double-buffered footprint fits the budget.

    Constraints: tb divides batch and tb*n_query is sublane-aligned (or the
    block covers the whole batch).  Prefers >=2 grid steps so v7x's two
    TensorCores both get work.
    """
    divisors = [d for d in range(1, batch + 1) if batch % d == 0]
    valid = [d for d in divisors
             if (d * n_query) % row_align == 0 or d == batch]
    fits = [d for d in valid if step_bytes_fn(d) <= budget]
    if not fits:
        # TODO(synk): tile graph_size with an online-softmax accumulation
        # (m/l/acc scratch + pl.when init/finalize) instead of shrinking the
        # batch block when even the smallest valid block overflows VMEM.
        return min(valid)
    multi = [d for d in fits if batch // d >= 2]
    return max(multi) if multi else max(fits)


def attention_forward(q, K, V, W_query, W_out, mask=None,
                      compute_dtype=jnp.bfloat16):
    n_heads, input_dim, key_dim = W_query.shape
    batch_size, n_query, _ = q.shape
    _, _, graph_size, val_dim = V.shape
    embed_dim = W_out.shape[-1]
    # The torch module's flatten-and-mm output projection requires this
    # (it holds for the module's default val_dim = key_dim = embed_dim // H).
    assert val_dim == key_dim and W_out.shape[1] == key_dim, (
        "Attention output projection requires val_dim == key_dim")
    norm_factor = 1.0 / math.sqrt(key_dim)

    # --- Wrapper-side layout plumbing (lane/sublane-dense operands) ---------
    q2d = q.reshape(batch_size * n_query, input_dim).astype(compute_dtype)
    wq_fused = jnp.transpose(W_query, (1, 0, 2)).reshape(
        input_dim, n_heads * key_dim).astype(compute_dtype)
    k_lane = jnp.transpose(K, (1, 2, 0, 3)).reshape(
        batch_size, graph_size, n_heads * key_dim).astype(compute_dtype)
    v_lane = jnp.transpose(V, (1, 2, 0, 3)).reshape(
        batch_size, graph_size, n_heads * val_dim).astype(compute_dtype)
    wout2d = W_out.reshape(n_heads * val_dim, embed_dim).astype(compute_dtype)

    has_mask = mask is not None
    row_align = 16 if jnp.dtype(compute_dtype).itemsize == 2 else 8
    vmem_cap = _vmem_capacity_bytes()
    step_bytes = functools.partial(
        _step_vmem_bytes, n_query=n_query, input_dim=input_dim,
        graph=graph_size, n_heads=n_heads, key_dim=key_dim, val_dim=val_dim,
        embed_dim=embed_dim, compute_dtype=compute_dtype, has_mask=has_mask)
    tb = _choose_batch_block(batch_size, n_query, row_align, step_bytes,
                             budget=int(0.65 * vmem_cap))
    grid = (batch_size // tb,)
    vmem_limit = min(int(0.9 * vmem_cap),
                     max(2 * step_bytes(tb), 32 * 1024 * 1024))

    in_specs = [
        pl.BlockSpec((tb * n_query, input_dim), lambda b: (b, 0)),
        pl.BlockSpec((input_dim, n_heads * key_dim), lambda b: (0, 0)),
        pl.BlockSpec((tb, graph_size, n_heads * key_dim), lambda b: (b, 0, 0)),
        pl.BlockSpec((tb, graph_size, n_heads * val_dim), lambda b: (b, 0, 0)),
        pl.BlockSpec((n_heads * val_dim, embed_dim), lambda b: (0, 0)),
    ]
    args = [q2d, wq_fused, k_lane, v_lane, wout2d]

    if has_mask:
        mask3 = jnp.reshape(mask, (batch_size, n_query, graph_size))
        # Raw mask applied in-kernel (no wrapper-side f32 bias array); int8
        # would shave the remaining (already tiny) mask DMA bytes further.
        args.append(mask3.astype(jnp.int32))
        in_specs.append(pl.BlockSpec((tb, n_query, graph_size),
                                     lambda b: (b, 0, 0)))

    kernel = functools.partial(_attention_kernel, norm_factor=norm_factor,
                               n_heads=n_heads, key_dim=key_dim,
                               val_dim=val_dim)

    out2d = pl.pallas_call(
        kernel,
        out_shape=jax.ShapeDtypeStruct((batch_size * n_query, embed_dim),
                                       jnp.float32),
        grid=grid,
        in_specs=in_specs,
        out_specs=pl.BlockSpec((tb * n_query, embed_dim), lambda b: (b, 0)),
        compiler_params=pltpu.CompilerParams(
            dimension_semantics=("parallel",),
            vmem_limit_bytes=int(vmem_limit)),
    )(*args)
    return out2d.reshape(batch_size, n_query, embed_dim)


def attention_reference(q, K, V, W_query, W_out, mask=None):
    """Pure-JAX f32 reference matching the torch forward."""
    n_heads, input_dim, key_dim = W_query.shape
    batch_size, n_query, _ = q.shape
    graph_size = K.shape[2]
    norm_factor = 1.0 / math.sqrt(key_dim)

    qflat = q.reshape(-1, input_dim)
    Q = jnp.matmul(qflat, W_query).reshape(n_heads, batch_size, n_query, key_dim)
    compat = norm_factor * jnp.matmul(Q, jnp.swapaxes(K, 2, 3))
    if mask is not None:
        m = jnp.broadcast_to(
            mask.reshape(1, batch_size, n_query, graph_size), compat.shape)
        compat = jnp.where(m, -jnp.inf, compat)
    attn = jax.nn.softmax(compat, axis=-1)
    if mask is not None:
        attn = jnp.where(m, 0.0, attn)
    heads = jnp.matmul(attn, V)                       # (H, B, nq, val)
    val_dim = V.shape[-1]
    embed_dim = W_out.shape[-1]
    out = jnp.matmul(
        jnp.transpose(heads, (1, 2, 0, 3)).reshape(-1, n_heads * val_dim),
        W_out.reshape(-1, embed_dim),
    ).reshape(batch_size, n_query, embed_dim)
    return out


if __name__ == "__main__":
    # Module hyper-parameters (val_dim = key_dim = embed_dim // n_heads).
    n_heads = 2
    input_dim = 16
    embed_dim = 32
    key_dim = val_dim = embed_dim // n_heads

    batch_size = 2
    n_query = 4
    graph_size = 8

    key = jax.random.PRNGKey(0)
    k_wq, k_wo, k_q, k_K, k_V, k_m = jax.random.split(key, 6)

    stdv_q = 1.0 / math.sqrt(key_dim)
    stdv_o = 1.0 / math.sqrt(embed_dim)
    W_query = jax.random.uniform(k_wq, (n_heads, input_dim, key_dim),
                                 jnp.float32, -stdv_q, stdv_q)
    W_out = jax.random.uniform(k_wo, (n_heads, key_dim, embed_dim),
                               jnp.float32, -stdv_o, stdv_o)

    q = jax.random.normal(k_q, (batch_size, n_query, input_dim), jnp.float32)
    K = jax.random.normal(k_K, (n_heads, batch_size, graph_size, key_dim),
                          jnp.float32)
    V = jax.random.normal(k_V, (n_heads, batch_size, graph_size, val_dim),
                          jnp.float32)

    # Random mask (True = attention not possible); keep >=1 unmasked per row.
    mask = jax.random.bernoulli(k_m, 0.3, (batch_size, n_query, graph_size))
    mask = mask.at[:, :, 0].set(False)

    ref = attention_reference(q, K, V, W_query, W_out, mask)
    ref_nm = attention_reference(q, K, V, W_query, W_out, None)

    # Fast path: bf16 MXU operands, f32 softmax/accumulation, approx recip.
    out = jax.block_until_ready(attention_forward(q, K, V, W_query, W_out, mask))
    assert out.shape == (batch_size, n_query, embed_dim)
    assert jnp.allclose(out, ref, atol=5e-2, rtol=5e-2), "mismatch (bf16, mask)"

    # Specialized no-mask path.
    out_nm = jax.block_until_ready(
        attention_forward(q, K, V, W_query, W_out, None))
    assert jnp.allclose(out_nm, ref_nm, atol=5e-2, rtol=5e-2), "mismatch (bf16)"

    # f32-compute path for a tighter numerical check of the same kernel.
    out_f32 = jax.block_until_ready(
        attention_forward(q, K, V, W_query, W_out, mask,
                          compute_dtype=jnp.float32))
    assert jnp.allclose(out_f32, ref, atol=1e-2, rtol=1e-2), "mismatch (f32)"

    print("KERNEL_OK")
</pallas_src>

<mosaic_0001>
module attributes {stable_mosaic.version = 11 : i64} {
  func.func @_attention_kernel(%arg0: i32, %arg1: memref<8x16xbf16, #tpu.memory_space<vmem>>, %arg2: memref<16x32xbf16, #tpu.memory_space<vmem>>, %arg3: memref<2x8x32xbf16, #tpu.memory_space<vmem>>, %arg4: memref<2x8x32xbf16, #tpu.memory_space<vmem>>, %arg5: memref<32x32xbf16, #tpu.memory_space<vmem>>, %arg6: memref<2x4x8xi32, #tpu.memory_space<vmem>>, %arg7: memref<8x32xf32, #tpu.memory_space<vmem>>) attributes {dimension_semantics = [#tpu.dimension_semantics<parallel>], iteration_bounds = array<i64: 1>, scalar_prefetch = 0 : i64, scratch_operands = 0 : i64, tpu.core_type = #tpu.core_type<tc>, window_params = [{transform_indices = @transform_0, window_bounds = array<i64: 8, 16>}, {pipeline_mode = #tpu.pipeline_mode<synchronous>, transform_indices = @transform_1, window_bounds = array<i64: 16, 32>}, {transform_indices = @transform_2, window_bounds = array<i64: 2, 8, 32>}, {transform_indices = @transform_3, window_bounds = array<i64: 2, 8, 32>}, {pipeline_mode = #tpu.pipeline_mode<synchronous>, transform_indices = @transform_4, window_bounds = array<i64: 32, 32>}, {transform_indices = @transform_5, window_bounds = array<i64: 2, 4, 8>}, {transform_indices = @transform_6, window_bounds = array<i64: 8, 32>}]} {
    %c0 = arith.constant 0 : index
    %c0_0 = arith.constant 0 : index
    %0 = vector.load %arg1[%c0, %c0_0] : memref<8x16xbf16, #tpu.memory_space<vmem>>, vector<8x16xbf16>
    %c0_1 = arith.constant 0 : index
    %c0_2 = arith.constant 0 : index
    %1 = vector.load %arg2[%c0_1, %c0_2] : memref<16x32xbf16, #tpu.memory_space<vmem>>, vector<16x32xbf16>
    %cst = arith.constant dense<0.000000e+00> : vector<8x32xf32>
    %2 = tpu.matmul %0, %1, %cst {dimension_numbers = #tpu.dot_dimension_numbers<[1], [0], [0], [1], [0, 0, 1, 1], [], []>} : vector<8x16xbf16>, vector<16x32xbf16>, vector<8x32xf32> -> vector<8x32xf32>
    %3 = vector.shape_cast %2 : vector<8x32xf32> to vector<2x4x32xf32>
    %4 = arith.truncf %3 : vector<2x4x32xf32> to vector<2x4x32xbf16>
    %c0_3 = arith.constant 0 : index
    %c0_4 = arith.constant 0 : index
    %c0_5 = arith.constant 0 : index
    %5 = vector.load %arg3[%c0_3, %c0_4, %c0_5] : memref<2x8x32xbf16, #tpu.memory_space<vmem>>, vector<2x8x32xbf16>
    %c0_6 = arith.constant 0 : index
    %c0_7 = arith.constant 0 : index
    %c0_8 = arith.constant 0 : index
    %6 = vector.load %arg4[%c0_6, %c0_7, %c0_8] : memref<2x8x32xbf16, #tpu.memory_space<vmem>>, vector<2x8x32xbf16>
    %c0_9 = arith.constant 0 : index
    %c0_10 = arith.constant 0 : index
    %c0_11 = arith.constant 0 : index
    %7 = vector.load %arg6[%c0_9, %c0_10, %c0_11] : memref<2x4x8xi32, #tpu.memory_space<vmem>>, vector<2x4x8xi32>
    %c0_i32 = arith.constant 0 : i32
    %8 = vector.broadcast %c0_i32 : i32 to vector<2x4x8xi32>
    %9 = arith.cmpi ne, %7, %8 : vector<2x4x8xi32>
    %10 = vector.extract_strided_slice %4 {offsets = [0, 0, 0], sizes = [2, 4, 16], strides = [1, 1, 1]} : vector<2x4x32xbf16> to vector<2x4x16xbf16>
    %11 = vector.extract_strided_slice %5 {offsets = [0, 0, 0], sizes = [2, 8, 16], strides = [1, 1, 1]} : vector<2x8x32xbf16> to vector<2x8x16xbf16>
    %12 = vector.extract_strided_slice %6 {offsets = [0, 0, 0], sizes = [2, 8, 16], strides = [1, 1, 1]} : vector<2x8x32xbf16> to vector<2x8x16xbf16>
    %cst_12 = arith.constant dense<0.000000e+00> : vector<2x4x8xf32>
    %13 = tpu.matmul %10, %11, %cst_12 {dimension_numbers = #tpu.dot_dimension_numbers<[2], [2], [1], [1], [0, 0, 0, 1, 1, 1], [0], [0]>} : vector<2x4x16xbf16>, vector<2x8x16xbf16>, vector<2x4x8xf32> -> vector<2x4x8xf32>
    %cst_13 = arith.constant 2.500000e-01 : f32
    %14 = vector.broadcast %cst_13 : f32 to vector<2x4x8xf32>
    %15 = arith.mulf %14, %13 : vector<2x4x8xf32>
    %cst_14 = arith.constant -1.000000e+30 : f32
    %16 = vector.broadcast %cst_14 : f32 to vector<2x4x8xf32>
    %17 = arith.select %9, %16, %15 : vector<2x4x8xi1>, vector<2x4x8xf32>
    %cst_15 = arith.constant dense<0xFF800000> : vector<2x4xf32>
    %18 = vector.multi_reduction <maximumf>, %17, %cst_15 [2] : vector<2x4x8xf32> to vector<2x4xf32>
    %19 = vector.shape_cast %18 : vector<2x4xf32> to vector<2x4x1xf32>
    %20 = vector.broadcast %19 : vector<2x4x1xf32> to vector<2x4x8xf32>
    %21 = arith.subf %17, %20 : vector<2x4x8xf32>
    %22 = math.exp %21 : vector<2x4x8xf32>
    %cst_16 = arith.constant dense<0.000000e+00> : vector<2x4xf32>
    %23 = vector.multi_reduction <add>, %22, %cst_16 [2] : vector<2x4x8xf32> to vector<2x4xf32>
    %24 = vector.shape_cast %23 : vector<2x4xf32> to vector<2x4x1xf32>
    %25 = tpu.reciprocal %24 {approx = true} : vector<2x4x1xf32> -> vector<2x4x1xf32>
    %26 = vector.broadcast %25 : vector<2x4x1xf32> to vector<2x4x8xf32>
    %27 = arith.mulf %22, %26 : vector<2x4x8xf32>
    %28 = arith.truncf %27 : vector<2x4x8xf32> to vector<2x4x8xbf16>
    %cst_17 = arith.constant dense<0.000000e+00> : vector<2x4x16xf32>
    %29 = tpu.matmul %28, %12, %cst_17 {dimension_numbers = #tpu.dot_dimension_numbers<[2], [1], [1], [2], [0, 0, 0, 1, 1, 2], [0], [0]>} : vector<2x4x8xbf16>, vector<2x8x16xbf16>, vector<2x4x16xf32> -> vector<2x4x16xf32>
    %30 = vector.extract_strided_slice %4 {offsets = [0, 0, 16], sizes = [2, 4, 16], strides = [1, 1, 1]} : vector<2x4x32xbf16> to vector<2x4x16xbf16>
    %31 = vector.extract_strided_slice %5 {offsets = [0, 0, 16], sizes = [2, 8, 16], strides = [1, 1, 1]} : vector<2x8x32xbf16> to vector<2x8x16xbf16>
    %32 = vector.extract_strided_slice %6 {offsets = [0, 0, 16], sizes = [2, 8, 16], strides = [1, 1, 1]} : vector<2x8x32xbf16> to vector<2x8x16xbf16>
    %cst_18 = arith.constant dense<0.000000e+00> : vector<2x4x8xf32>
    %33 = tpu.matmul %30, %31, %cst_18 {dimension_numbers = #tpu.dot_dimension_numbers<[2], [2], [1], [1], [0, 0, 0, 1, 1, 1], [0], [0]>} : vector<2x4x16xbf16>, vector<2x8x16xbf16>, vector<2x4x8xf32> -> vector<2x4x8xf32>
    %cst_19 = arith.constant 2.500000e-01 : f32
    %34 = vector.broadcast %cst_19 : f32 to vector<2x4x8xf32>
    %35 = arith.mulf %34, %33 : vector<2x4x8xf32>
    %cst_20 = arith.constant -1.000000e+30 : f32
    %36 = vector.broadcast %cst_20 : f32 to vector<2x4x8xf32>
    %37 = arith.select %9, %36, %35 : vector<2x4x8xi1>, vector<2x4x8xf32>
    %cst_21 = arith.constant dense<0xFF800000> : vector<2x4xf32>
    %38 = vector.multi_reduction <maximumf>, %37, %cst_21 [2] : vector<2x4x8xf32> to vector<2x4xf32>
    %39 = vector.shape_cast %38 : vector<2x4xf32> to vector<2x4x1xf32>
    %40 = vector.broadcast %39 : vector<2x4x1xf32> to vector<2x4x8xf32>
    %41 = arith.subf %37, %40 : vector<2x4x8xf32>
    %42 = math.exp %41 : vector<2x4x8xf32>
    %cst_22 = arith.constant dense<0.000000e+00> : vector<2x4xf32>
    %43 = vector.multi_reduction <add>, %42, %cst_22 [2] : vector<2x4x8xf32> to vector<2x4xf32>
    %44 = vector.shape_cast %43 : vector<2x4xf32> to vector<2x4x1xf32>
    %45 = tpu.reciprocal %44 {approx = true} : vector<2x4x1xf32> -> vector<2x4x1xf32>
    %46 = vector.broadcast %45 : vector<2x4x1xf32> to vector<2x4x8xf32>
    %47 = arith.mulf %42, %46 : vector<2x4x8xf32>
    %48 = arith.truncf %47 : vector<2x4x8xf32> to vector<2x4x8xbf16>
    %cst_23 = arith.constant dense<0.000000e+00> : vector<2x4x16xf32>
    %49 = tpu.matmul %48, %32, %cst_23 {dimension_numbers = #tpu.dot_dimension_numbers<[2], [1], [1], [2], [0, 0, 0, 1, 1, 2], [0], [0]>} : vector<2x4x8xbf16>, vector<2x8x16xbf16>, vector<2x4x16xf32> -> vector<2x4x16xf32>
    %50 = tpu.concatenate %29, %49 in 2 : vector<2x4x16xf32>, vector<2x4x16xf32> -> vector<2x4x32xf32>
    %51 = vector.shape_cast %50 : vector<2x4x32xf32> to vector<8x32xf32>
    %52 = arith.truncf %51 : vector<8x32xf32> to vector<8x32xbf16>
    %c0_24 = arith.constant 0 : index
    %c0_25 = arith.constant 0 : index
    %53 = vector.load %arg5[%c0_24, %c0_25] : memref<32x32xbf16, #tpu.memory_space<vmem>>, vector<32x32xbf16>
    %cst_26 = arith.constant dense<0.000000e+00> : vector<8x32xf32>
    %54 = tpu.matmul %52, %53, %cst_26 {dimension_numbers = #tpu.dot_dimension_numbers<[1], [0], [0], [1], [0, 0, 1, 1], [], []>} : vector<8x32xbf16>, vector<32x32xbf16>, vector<8x32xf32> -> vector<8x32xf32>
    %c0_27 = arith.constant 0 : index
    %c0_28 = arith.constant 0 : index
    %55 = vector.load %arg7[%c0_27, %c0_28] : memref<8x32xf32, #tpu.memory_space<vmem>>, vector<8x32xf32>
    tpu.vector_store %arg7[%c0_27, %c0_28], %54 {strides = array<i32>} : memref<8x32xf32, #tpu.memory_space<vmem>>, vector<8x32xf32>,
    return
  }
  func.func @transform_0(%arg0: i32) -> (i32, i32) {
    %c0_i32 = arith.constant 0 : i32
    %c0_i32_0 = arith.constant 0 : i32
    return %arg0, %c0_i32 : i32, i32
  }
  func.func @transform_1(%arg0: i32) -> (i32, i32) {
    %c0_i32 = arith.constant 0 : i32
    %c0_i32_0 = arith.constant 0 : i32
    %c0_i32_1 = arith.constant 0 : i32
    return %c0_i32, %c0_i32_0 : i32, i32
  }
  func.func @transform_2(%arg0: i32) -> (i32, i32, i32) {
    %c0_i32 = arith.constant 0 : i32
    %c0_i32_0 = arith.constant 0 : i32
    %c0_i32_1 = arith.constant 0 : i32
    return %arg0, %c0_i32, %c0_i32_0 : i32, i32, i32
  }
  func.func @transform_3(%arg0: i32) -> (i32, i32, i32) {
    %c0_i32 = arith.constant 0 : i32
    %c0_i32_0 = arith.constant 0 : i32
    %c0_i32_1 = arith.constant 0 : i32
    return %arg0, %c0_i32, %c0_i32_0 : i32, i32, i32
  }
  func.func @transform_4(%arg0: i32) -> (i32, i32) {
    %c0_i32 = arith.constant 0 : i32
    %c0_i32_0 = arith.constant 0 : i32
    %c0_i32_1 = arith.constant 0 : i32
    return %c0_i32, %c0_i32_0 : i32, i32
  }
  func.func @transform_5(%arg0: i32) -> (i32, i32, i32) {
    %c0_i32 = arith.constant 0 : i32
    %c0_i32_0 = arith.constant 0 : i32
    %c0_i32_1 = arith.constant 0 : i32
    return %arg0, %c0_i32, %c0_i32_0 : i32, i32, i32
  }
  func.func @transform_6(%arg0: i32) -> (i32, i32) {
    %c0_i32 = arith.constant 0 : i32
    %c0_i32_0 = arith.constant 0 : i32
    return %arg0, %c0_i32 : i32, i32
  }
}

</mosaic_0001>

<llo_original>
// kernel: tpu_custom_call.1
$region0: #{tpu_custom_call.1}
  #allocation0 [shape = 'u32[]', space=smem, size = 0x4, offset = 0x4, fixed_abs, tag = 'smem constant byte address 0x4 - core index']
  #allocation1 [shape = 'u32[72,128]{1,0:T(1,128)}', space=vmem, size = 0x9000, scoped, tag = 'internal scratch']
  %s0 = inlined_call_operand.hbm [shape: bf16[8,16], index: 0, kind: input, shape index: {}]
  %s1 = inlined_call_operand.hbm [shape: bf16[16,32], index: 1, kind: input, shape index: {}]
  %s2 = inlined_call_operand.hbm [shape: bf16[2,8,32], index: 2, kind: input, shape index: {}]
  %s3 = inlined_call_operand.hbm [shape: bf16[2,8,32], index: 3, kind: input, shape index: {}]
  %s4 = inlined_call_operand.hbm [shape: bf16[32,32], index: 4, kind: input, shape index: {}]
  %s5 = inlined_call_operand.hbm [shape: s32[2,4,8], index: 5, kind: input, shape index: {}]
  %s6 = inlined_call_operand.hbm [shape: f32[8,32], index: 6, kind: output, shape index: {}]
  %s7 = sld [smem:[#allocation0]]
  $region58: #{tpu_custom_call.1} parent=0
    _
  %s9 = ssub.s32 1, %s7
  %s10 = scalar_select 0, %s9, %s7
  $region1: #{tpu_custom_call.1} parent=0
    #allocation2 [shape = 'u8[2048]{0}', space=vmem, size = 0x800, scoped, tag = 'input window, operand 0, single buffered']
    #allocation3 [shape = 's32[1]{0}', space=sflag, size = 0x4, scoped, tag = 'scoped memory for tpu_custom_call.1']
    #allocation4 [shape = 's32[1]{0}', space=sflag, size = 0x4, scoped, tag = 'scoped memory for tpu_custom_call.1']
    #allocation5 [shape = 'u8[4096]{0}', space=vmem, size = 0x1000, scoped, tag = 'input window, operand 1, single buffered']
    #allocation6 [shape = 's32[1]{0}', space=sflag, size = 0x4, scoped, tag = 'scoped memory for tpu_custom_call.1']
    #allocation7 [shape = 'u8[4096]{0}', space=vmem, size = 0x1000, scoped, tag = 'input window, operand 2, single buffered']
    #allocation8 [shape = 'u8[4096]{0}', space=vmem, size = 0x1000, scoped, tag = 'input window, operand 3, single buffered']
    #allocation9 [shape = 's32[1]{0}', space=sflag, size = 0x4, scoped, tag = 'scoped memory for tpu_custom_call.1']
    #allocation10 [shape = 'u8[8192]{0}', space=vmem, size = 0x2000, scoped, tag = 'input window, operand 4, single buffered']
    #allocation11 [shape = 'u8[4096]{0}', space=vmem, size = 0x1000, scoped, tag = 'input window, operand 5, single buffered']
    #allocation12 [shape = 's32[1]{0}', space=sflag, size = 0x4, scoped, tag = 'scoped memory for tpu_custom_call.1']
    #allocation13 [shape = 'u8[4096]{0}', space=vmem, size = 0x1000, scoped, tag = 'output window, operand 0, single buffered']
    %11 = vsyncpa [#allocation3], 0
    %12 = vsyncpa [#allocation6], 0
    %13 = vsyncpa [#allocation9], 0
    %14 = vsyncpa [#allocation12], 0
    %15 = vsyncpa [#allocation4], 0
    // Predicated region
    $region2: #{tpu_custom_call.1} parent=1 // pred_check
      _
    $region3: #{tpu_custom_call.1} parent=1 // pred_check_branch
      %17 = sbr.rel (0) target = $region5
    $region4: #{tpu_custom_call.1} parent=1 // pred_region
      %19 = vsyncadd [#allocation3], 0
      %s21 = sshll.u32 %s0, 4
      %s22 = int_to_ptr.hbm [resolvable:$true] %s21
      %s23 = sshll.u32 [#allocation2], 4
      %s24 = int_to_ptr.vmem [resolvable:$true] %s23
      %26 = dma.hbm_to_vmem [thread:$0]  %s22, 64, %s24, [#allocation3]
    $region5: #{tpu_custom_call.1} parent=1 // pred_fallthru
      _
    // Predicated region
    $region6: #{tpu_custom_call.1} parent=1 // pred_check
      _
    $region7: #{tpu_custom_call.1} parent=1 // pred_check_branch
      %28 = sbr.rel (0) target = $region9
    $region8: #{tpu_custom_call.1} parent=1 // pred_region
      %30 = vsyncadd [#allocation6], 0
      %s31 = sshll.u32 %s1, 4
      %s32 = int_to_ptr.hbm [resolvable:$true] %s31
      %s33 = sshll.u32 [#allocation5], 4
      %s34 = int_to_ptr.vmem [resolvable:$true] %s33
      %39 = dma.hbm_to_vmem [thread:$0]  %s32, 128, %s34, [#allocation6], 64, 64, 4
    $region9: #{tpu_custom_call.1} parent=1 // pred_fallthru
      _
    // Predicated region
    $region10: #{tpu_custom_call.1} parent=1 // pred_check
      _
    $region11: #{tpu_custom_call.1} parent=1 // pred_check_branch
      %41 = sbr.rel (0) target = $region13
    $region12: #{tpu_custom_call.1} parent=1 // pred_region
      %43 = vsyncadd [#allocation6], 0
      %s44 = sshll.u32 %s2, 4
      %s45 = int_to_ptr.hbm [resolvable:$true] %s44
      %s46 = sshll.u32 [#allocation7], 4
      %s47 = int_to_ptr.vmem [resolvable:$true] %s46
      %52 = dma.hbm_to_vmem [thread:$0]  %s45, 128, %s47, [#allocation6], 64, 64, 4
    $region13: #{tpu_custom_call.1} parent=1 // pred_fallthru
      _
    // Predicated region
    $region14: #{tpu_custom_call.1} parent=1 // pred_check
      _
    $region15: #{tpu_custom_call.1} parent=1 // pred_check_branch
      %54 = sbr.rel (0) target = $region17
    $region16: #{tpu_custom_call.1} parent=1 // pred_region
      %56 = vsyncadd [#allocation9], 0
      %s57 = sshll.u32 %s3, 4
      %s58 = int_to_ptr.hbm [resolvable:$true] %s57
      %s59 = sshll.u32 [#allocation8], 4
      %s60 = int_to_ptr.vmem [resolvable:$true] %s59
      %65 = dma.hbm_to_vmem [thread:$0]  %s58, 128, %s60, [#allocation9], 64, 64, 4
    $region17: #{tpu_custom_call.1} parent=1 // pred_fallthru
      _
    // Predicated region
    $region18: #{tpu_custom_call.1} parent=1 // pred_check
      _
    $region19: #{tpu_custom_call.1} parent=1 // pred_check_branch
      %67 = sbr.rel (0) target = $region21
    $region20: #{tpu_custom_call.1} parent=1 // pred_region
      %69 = vsyncadd [#allocation9], 0
      %s70 = sshll.u32 %s4, 4
      %s71 = int_to_ptr.hbm [resolvable:$true] %s70
      %s72 = sshll.u32 [#allocation10], 4
      %s73 = int_to_ptr.vmem [resolvable:$true] %s72
      %78 = dma.hbm_to_vmem [thread:$0]  %s71, 256, %s73, [#allocation9], 64, 64, 4
    $region21: #{tpu_custom_call.1} parent=1 // pred_fallthru
      _
    // Predicated region
    $region22: #{tpu_custom_call.1} parent=1 // pred_check
      _
    $region23: #{tpu_custom_call.1} parent=1 // pred_check_branch
      %80 = sbr.rel (0) target = $region25
    $region24: #{tpu_custom_call.1} parent=1 // pred_region
      %82 = vsyncadd [#allocation12], 0
      %s83 = sshll.u32 %s5, 4
      %s84 = int_to_ptr.hbm [resolvable:$true] %s83
      %s85 = sshll.u32 [#allocation11], 4
      %s86 = int_to_ptr.vmem [resolvable:$true] %s85
      %91 = dma.hbm_to_vmem [thread:$0]  %s84, 128, %s86, [#allocation12], 64, 64, 4
    $region25: #{tpu_custom_call.1} parent=1 // pred_fallthru
      _
    // Predicated region
    $region26: #{tpu_custom_call.1} parent=1 // pred_check
      _
    $region27: #{tpu_custom_call.1} parent=1 // pred_check_branch
      %93 = sbr.rel (0) target = $region29
    $region28: #{tpu_custom_call.1} parent=1 // pred_region
      %95 = dma.done [#allocation3], 64
    $region29: #{tpu_custom_call.1} parent=1 // pred_fallthru
      _
    // Predicated region
    $region30: #{tpu_custom_call.1} parent=1 // pred_check
      _
    $region31: #{tpu_custom_call.1} parent=1 // pred_check_branch
      %97 = sbr.rel (0) target = $region33
    $region32: #{tpu_custom_call.1} parent=1 // pred_region
      %99 = dma.done [#allocation6], 128
    $region33: #{tpu_custom_call.1} parent=1 // pred_fallthru
      _
    // Predicated region
    $region34: #{tpu_custom_call.1} parent=1 // pred_check
      _
    $region35: #{tpu_custom_call.1} parent=1 // pred_check_branch
      %101 = sbr.rel (0) target = $region37
    $region36: #{tpu_custom_call.1} parent=1 // pred_region
      %103 = dma.done [#allocation6], 128
    $region37: #{tpu_custom_call.1} parent=1 // pred_fallthru
      _
    // Predicated region
    $region38: #{tpu_custom_call.1} parent=1 // pred_check
      _
    $region39: #{tpu_custom_call.1} parent=1 // pred_check_branch
      %105 = sbr.rel (0) target = $region41
    $region40: #{tpu_custom_call.1} parent=1 // pred_region
      %107 = dma.done [#allocation9], 128
    $region41: #{tpu_custom_call.1} parent=1 // pred_fallthru
      _
    // Predicated region
    $region42: #{tpu_custom_call.1} parent=1 // pred_check
      _
    $region43: #{tpu_custom_call.1} parent=1 // pred_check_branch
      %109 = sbr.rel (0) target = $region45
    $region44: #{tpu_custom_call.1} parent=1 // pred_region
      %111 = dma.done [#allocation9], 256
    $region45: #{tpu_custom_call.1} parent=1 // pred_fallthru
      _
    // Predicated region
    $region46: #{tpu_custom_call.1} parent=1 // pred_check
      _
    $region47: #{tpu_custom_call.1} parent=1 // pred_check_branch
      %113 = sbr.rel (0) target = $region49
    $region48: #{tpu_custom_call.1} parent=1 // pred_region
      %115 = dma.done [#allocation12], 128
    $region49: #{tpu_custom_call.1} parent=1 // pred_fallthru
      _
    %v117 = vld [vmem:[#allocation2] sm:$0xf]
    %v118 = vld [vmem:[#allocation5] sm:$0xf]
    %v119 = vld [vmem:[#allocation5 + $0x4] sm:$0xf]
    %v122 = vunpack.c.l.b16 %v118
    %v123 = vunpack.c.l.b16 %v119
    %v124 = vpack.c.b16 %v123, %v122
    %vm126 = vcmask 130048
    %v128 = vsel %vm126, %v117, 0
    %130 = vmatpush.bf16.msra.mxu0 0
    %131 = vmatpush.bf16.msra.mxu0 0
    %132 = vmatpush.bf16.msra.mxu0 0
    %133 = vmatpush.bf16.msra.mxu0 0
    %134 = vmatpush.bf16.msra.mxu0 0
    %135 = vmatpush.bf16.msra.mxu0 0
    %136 = vmatpush.bf16.msra.mxu0 0
    %137 = vmatpush.bf16.msra.mxu0 %v124
    %138 = vmatmul.bf16.gmra.mxu0 %v128
    %v139 = vpop.f32.mrf.mxu0
    %v140 = vadd.f32 0.0, %v139
    %v141 = vpop.f32.mrf.mxu0
    %142 = vdwg.mxu0
    %v144 = vrot.slane %v140, 4
    %v146 = vpack.c.bf16 %v140, %v140
    %v147 = vpack.c.bf16 %v144, %v144
    %v148 = vld [vmem:[#allocation7] sm:$0xf]
    %v149 = vld [vmem:[#allocation7 + $0x4] sm:$0xf]
    %v150 = vld [vmem:[#allocation8] sm:$0xf]
    %v151 = vld [vmem:[#allocation8 + $0x4] sm:$0xf]
    %v152 = vld [vmem:[#allocation11] sm:$0xf]
    %v153 = vld [vmem:[#allocation11 + $0x4] sm:$0xf]
    %vm154 = vcmp.ne.s32.totalorder %v152, 0
    %vm155 = vcmp.ne.s32.totalorder %v153, 0
    %v157 = vsel %vm126, %v146, 0
    %v160 = vsel %vm126, %v148, 0
    %162 = vmatpush.bf16.xpose.msra.mxu0 0
    %163 = vmatpush.bf16.xpose.msra.mxu0 0
    %164 = vmatpush.bf16.xpose.msra.mxu0 0
    %165 = vmatpush.bf16.xpose.msra.mxu0 0
    %166 = vmatpush.bf16.xpose.msra.mxu0 0
    %167 = vmatpush.bf16.xpose.msra.mxu0 0
    %168 = vmatpush.bf16.xpose.msra.mxu0 0
    %169 = vmatpush.bf16.xpose.msra.mxu0 %v160
    %170 = vmatmul.bf16.gmra.mxu0 %v157
    %v171 = vpop.f32.mrf.mxu0
    %v172 = vadd.f32 0.0, %v171
    %v173 = vpop.f32.mrf.mxu0
    %174 = vdwg.mxu0
    %v176 = vsel %vm126, %v147, 0
    %v179 = vsel %vm126, %v149, 0
    %181 = vmatpush.bf16.xpose.msra.mxu0 0
    %182 = vmatpush.bf16.xpose.msra.mxu0 0
    %183 = vmatpush.bf16.xpose.msra.mxu0 0
    %184 = vmatpush.bf16.xpose.msra.mxu0 0
    %185 = vmatpush.bf16.xpose.msra.mxu0 0
    %186 = vmatpush.bf16.xpose.msra.mxu0 0
    %187 = vmatpush.bf16.xpose.msra.mxu0 0
    %188 = vmatpush.bf16.xpose.msra.mxu0 %v179
    %189 = vmatmul.bf16.gmra.mxu0 %v176
    %v190 = vpop.f32.mrf.mxu0
    %v191 = vadd.f32 0.0, %v190
    %v192 = vpop.f32.mrf.mxu0
    %193 = vdwg.mxu0
    %v194 = vmul.f32 %v172, 0.25
    %v195 = vmul.f32 %v191, 0.25
    %v196 = vsel %vm154, -1e+30, %v194
    %v197 = vsel %vm155, -1e+30, %v195
    %vm198 = vcmask 60416
    %v199 = vsel %vm198, %v196, -inf
    %200 = vmax.xlane.f32.xlu0 %v199
    %v201 = vpop.xlane.xlu0 %200
    %v202 = vsel %vm198, %v197, -inf
    %203 = vmax.xlane.f32.xlu0 %v202
    %v204 = vpop.xlane.xlu0 %203
    %v205 = vsub.f32 %v196, %v201
    %v206 = vsub.f32 %v197, %v204
    %v207 = vmul.f32 %v205, 1.442695
    %v208 = vpow.pop %v207
    %v209 = vmul.f32 %v206, 1.442695
    %v210 = vpow.pop %v209
    %v211 = vsel %vm198, %v208, 0.0
    %212 = vadd.xlane.f32.xlu0 %v211
    %v213 = vpop.xlane.xlu0 %212
    %v214 = vsel %vm198, %v210, 0.0
    %215 = vadd.xlane.f32.xlu0 %v214
    %v216 = vpop.xlane.xlu0 %215
    %v217 = vrcp.pop %v213
    %v218 = vrcp.pop %v216
    %v219 = vmul.f32 %v208, %v217
    %v220 = vmul.f32 %v210, %v218
    %v221 = vpack.c.bf16 %v219, %v219
    %v222 = vpack.c.bf16 %v220, %v220
    %vm223 = vcmask 64512
    %v225 = vsel %vm223, %v221, 0
    %vm227 = vcmask 1043456
    %v229 = vsel %vm227, %v150, 0
    %231 = vmatpush.bf16.msra.mxu0 0
    %232 = vmatpush.bf16.msra.mxu0 0
    %233 = vmatpush.bf16.msra.mxu0 0
    %234 = vmatpush.bf16.msra.mxu0 0
    %235 = vmatpush.bf16.msra.mxu0 0
    %236 = vmatpush.bf16.msra.mxu0 0
    %237 = vmatpush.bf16.msra.mxu0 0
    %238 = vmatpush.bf16.msra.mxu0 %v229
    %239 = vmatmul.bf16.gmra.mxu0 %v225
    %v240 = vpop.f32.mrf.mxu0
    %v241 = vadd.f32 0.0, %v240
    %v242 = vpop.f32.mrf.mxu0
    %243 = vdwg.mxu0
    %v245 = vsel %vm223, %v222, 0
    %v248 = vsel %vm227, %v151, 0
    %250 = vmatpush.bf16.msra.mxu0 0
    %251 = vmatpush.bf16.msra.mxu0 0
    %252 = vmatpush.bf16.msra.mxu0 0
    %253 = vmatpush.bf16.msra.mxu0 0
    %254 = vmatpush.bf16.msra.mxu0 0
    %255 = vmatpush.bf16.msra.mxu0 0
    %256 = vmatpush.bf16.msra.mxu0 0
    %257 = vmatpush.bf16.msra.mxu0 %v248
    %258 = vmatmul.bf16.gmra.mxu0 %v245
    %v259 = vpop.f32.mrf.mxu0
    %v260 = vadd.f32 0.0, %v259
    %v261 = vpop.f32.mrf.mxu0
    %262 = vdwg.mxu0
    %v264 = vunpack.c.l.b16 %v146
    %v265 = vpack.c.b16 %v264, %v264
    %266 = vrot.lane.b32.xlu0 %v265, 112
    %v267 = vpop.permute.xlu0 %266
    %v269 = vunpack.c.l.b16 %v148
    %v270 = vpack.c.b16 %v269, %v269
    %271 = vrot.lane.b32.xlu0 %v270, 112
    %v272 = vpop.permute.xlu0 %271
    %v274 = vsel %vm126, %v267, 0
    %v277 = vsel %vm126, %v272, 0
    %279 = vmatpush.bf16.xpose.msra.mxu0 0
    %280 = vmatpush.bf16.xpose.msra.mxu0 0
    %281 = vmatpush.bf16.xpose.msra.mxu0 0
    %282 = vmatpush.bf16.xpose.msra.mxu0 0
    %283 = vmatpush.bf16.xpose.msra.mxu0 0
    %284 = vmatpush.bf16.xpose.msra.mxu0 0
    %285 = vmatpush.bf16.xpose.msra.mxu0 0
    %286 = vmatpush.bf16.xpose.msra.mxu0 %v277
    %287 = vmatmul.bf16.gmra.mxu0 %v274
    %v288 = vpop.f32.mrf.mxu0
    %v289 = vadd.f32 0.0, %v288
    %v290 = vpop.f32.mrf.mxu0
    %291 = vdwg.mxu0
    %v293 = vunpack.c.l.b16 %v147
    %v294 = vpack.c.b16 %v293, %v293
    %295 = vrot.lane.b32.xlu0 %v294, 112
    %v296 = vpop.permute.xlu0 %295
    %v298 = vunpack.c.l.b16 %v149
    %v299 = vpack.c.b16 %v298, %v298
    %300 = vrot.lane.b32.xlu0 %v299, 112
    %v301 = vpop.permute.xlu0 %300
    %v303 = vsel %vm126, %v296, 0
    %v306 = vsel %vm126, %v301, 0
    %308 = vmatpush.bf16.xpose.msra.mxu0 0
    %309 = vmatpush.bf16.xpose.msra.mxu0 0
    %310 = vmatpush.bf16.xpose.msra.mxu0 0
    %311 = vmatpush.bf16.xpose.msra.mxu0 0
    %312 = vmatpush.bf16.xpose.msra.mxu0 0
    %313 = vmatpush.bf16.xpose.msra.mxu0 0
    %314 = vmatpush.bf16.xpose.msra.mxu0 0
    %315 = vmatpush.bf16.xpose.msra.mxu0 %v306
    %316 = vmatmul.bf16.gmra.mxu0 %v303
    %v317 = vpop.f32.mrf.mxu0
    %v318 = vadd.f32 0.0, %v317
    %v319 = vpop.f32.mrf.mxu0
    %320 = vdwg.mxu0
    %v321 = vmul.f32 %v289, 0.25
    %v322 = vmul.f32 %v318, 0.25
    %v323 = vsel %vm154, -1e+30, %v321
    %v324 = vsel %vm155, -1e+30, %v322
    %v325 = vsel %vm198, %v323, -inf
    %326 = vmax.xlane.f32.xlu0 %v325
    %v327 = vpop.xlane.xlu0 %326
    %v328 = vsel %vm198, %v324, -inf
    %329 = vmax.xlane.f32.xlu0 %v328
    %v330 = vpop.xlane.xlu0 %329
    %v331 = vsub.f32 %v323, %v327
    %v332 = vsub.f32 %v324, %v330
    %v333 = vmul.f32 %v331, 1.442695
    %v334 = vpow.pop %v333
    %v335 = vmul.f32 %v332, 1.442695
    %v336 = vpow.pop %v335
    %v337 = vsel %vm198, %v334, 0.0
    %338 = vadd.xlane.f32.xlu0 %v337
    %v339 = vpop.xlane.xlu0 %338
    %v340 = vsel %vm198, %v336, 0.0
    %341 = vadd.xlane.f32.xlu0 %v340
    %v342 = vpop.xlane.xlu0 %341
    %v343 = vrcp.pop %v339
    %v344 = vrcp.pop %v342
    %v345 = vmul.f32 %v334, %v343
    %v346 = vmul.f32 %v336, %v344
    %v347 = vpack.c.bf16 %v345, %v345
    %v348 = vpack.c.bf16 %v346, %v346
    %v350 = vunpack.c.l.b16 %v150
    %v351 = vpack.c.b16 %v350, %v350
    %352 = vrot.lane.b32.xlu0 %v351, 112
    %v353 = vpop.permute.xlu0 %352
    %v355 = vsel %vm223, %v347, 0
    %v358 = vsel %vm227, %v353, 0
    %360 = vmatpush.bf16.msra.mxu0 0
    %361 = vmatpush.bf16.msra.mxu0 0
    %362 = vmatpush.bf16.msra.mxu0 0
    %363 = vmatpush.bf16.msra.mxu0 0
    %364 = vmatpush.bf16.msra.mxu0 0
    %365 = vmatpush.bf16.msra.mxu0 0
    %366 = vmatpush.bf16.msra.mxu0 0
    %367 = vmatpush.bf16.msra.mxu0 %v358
    %368 = vmatmul.bf16.gmra.mxu0 %v355
    %v369 = vpop.f32.mrf.mxu0
    %v370 = vadd.f32 0.0, %v369
    %v371 = vpop.f32.mrf.mxu0
    %372 = vdwg.mxu0
    %v374 = vunpack.c.l.b16 %v151
    %v375 = vpack.c.b16 %v374, %v374
    %376 = vrot.lane.b32.xlu0 %v375, 112
    %v377 = vpop.permute.xlu0 %376
    %v379 = vsel %vm223, %v348, 0
    %v382 = vsel %vm227, %v377, 0
    %384 = vmatpush.bf16.msra.mxu0 0
    %385 = vmatpush.bf16.msra.mxu0 0
    %386 = vmatpush.bf16.msra.mxu0 0
    %387 = vmatpush.bf16.msra.mxu0 0
    %388 = vmatpush.bf16.msra.mxu0 0
    %389 = vmatpush.bf16.msra.mxu0 0
    %390 = vmatpush.bf16.msra.mxu0 0
    %391 = vmatpush.bf16.msra.mxu0 %v382
    %392 = vmatmul.bf16.gmra.mxu0 %v379
    %v393 = vpop.f32.mrf.mxu0
    %v394 = vadd.f32 0.0, %v393
    %v395 = vpop.f32.mrf.mxu0
    %396 = vdwg.mxu0
    %399 = vrot.lane.b32.xlu0 %v370, 16
    %v400 = vpop.permute.xlu0 %399
    %401 = vrot.lane.b32.xlu0 %v394, 16
    %v402 = vpop.permute.xlu0 %401
    %v405 = vsel %vm126, %v241, %v400
    %v406 = vsel %vm126, %v260, %v402
    %409 = vst [vmem:[#allocation1] ss:$2 sm:$0xff] %v405
    %s410 = scalar_lea.vmem [#allocation1], 1
    %411 = vst [vmem:[%s410] ss:$2 sm:$0xff] %v406
    %v412 = vld.sshfl [vmem:[#allocation1] sm:$0xff pattern:$0x75316420]
    %v414 = vpack.c.bf16 %v412, %v412
    %v415 = vld [vmem:[#allocation10] sm:$0xf]
    %v416 = vld [vmem:[#allocation10 + $0x4] sm:$0xf]
    %v417 = vld [vmem:[#allocation10 + $0x8] sm:$0xf]
    %v418 = vld [vmem:[#allocation10 + $0xc] sm:$0xf]
    %v423 = vunpack.c.l.b16 %v415
    %v424 = vunpack.c.l.b16 %v416
    %v425 = vunpack.c.l.b16 %v417
    %v426 = vunpack.c.l.b16 %v418
    %v427 = vpack.c.b16 %v424, %v423
    %v428 = vpack.c.b16 %v426, %v425
    %vm431 = vcmask 261120
    %v433 = vsel %vm431, %v414, 0
    %435 = vmatpush.bf16.msra.mxu0 0
    %436 = vmatpush.bf16.msra.mxu0 0
    %437 = vmatpush.bf16.msra.mxu0 0
    %438 = vmatpush.bf16.msra.mxu0 0
    %439 = vmatpush.bf16.msra.mxu0 0
    %440 = vmatpush.bf16.msra.mxu0 0
    %441 = vmatpush.bf16.msra.mxu0 %v428
    %442 = vmatpush.bf16.msra.mxu0 %v427
    %443 = vmatmul.bf16.gmra.mxu0 %v433
    %v444 = vpop.f32.mrf.mxu0
    %v445 = vadd.f32 0.0, %v444
    %v446 = vpop.f32.mrf.mxu0
    %447 = vdwg.mxu0
    %448 = vst.msk [vmem:[#allocation13] sm:$0xff] %vm431, %v445
    // Predicated region
    $region50: #{tpu_custom_call.1} parent=1 // pred_check
      _
    $region51: #{tpu_custom_call.1} parent=1 // pred_check_branch
      %450 = sbr.rel (0) target = $region53
    $region52: #{tpu_custom_call.1} parent=1 // pred_region
      %452 = vsyncadd [#allocation4], 0
      %s454 = sshll.u32 [#allocation13], 4
      %s455 = int_to_ptr.vmem [resolvable:$true] %s454
      %s456 = sshll.u32 %s6, 4
      %s457 = int_to_ptr.hbm [resolvable:$true] %s456
      %459 = dma.vmem_to_hbm [thread:$0]  %s455, 128, %s457, [#allocation4]
    $region53: #{tpu_custom_call.1} parent=1 // pred_fallthru
      _
    // Predicated region
    $region54: #{tpu_custom_call.1} parent=1 // pred_check
      _
    $region55: #{tpu_custom_call.1} parent=1 // pred_check_branch
      %461 = sbr.rel (0) target = $region57
    $region56: #{tpu_custom_call.1} parent=1 // pred_region
      %463 = dma.done [#allocation4], 128
    $region57: #{tpu_custom_call.1} parent=1 // pred_fallthru
      _
    %464 = vsyncpa [#allocation3], 1
    %465 = vsyncpa [#allocation6], 1
    %466 = vsyncpa [#allocation9], 1
    %467 = vsyncpa [#allocation12], 1
    %468 = vsyncpa [#allocation4], 1

</llo_original>
